<compile_context>
chip_gen: v5e
topology: v5e:2x2
jax: 0.10.0
libtpu: 0.0.40
codegen_flags: <defaults>
</compile_context>

<pallas_src>
import functools
import math

import jax
import jax.numpy as jnp
from jax.experimental import pallas as pl
from jax.experimental.pallas import tpu as pltpu

_SQRT_2_OVER_PI = math.sqrt(2.0 / math.pi)
_GELU_CUBIC_COEF = 0.44715  # matches the PyTorch module verbatim

_LANE = 128                       # rows mapped onto vreg lanes
_CHUNK_SUB = 8                    # row-groups processed per inner-loop step (one vreg of sublanes)
_ROW_GROUP = _LANE * _CHUNK_SUB   # row-padding unit: 1024 rows
_R_TILE_CANDIDATES = (512, 256, 128, 64, 32, 16, 8)  # row-groups per grid step


def _round_up(n: int, m: int) -> int:
    return ((n + m - 1) // m) * m


def _pick_r_tile(r: int) -> int:
    """r = number of 128-row groups (always a multiple of 8).

    Prefer tiles that give >= 2 grid steps so v7x's two TensorCores both get
    work; fall back to a single step only for tiny inputs (r == 8)."""
    for c in _R_TILE_CANDIDATES:
        if r % c == 0 and r // c >= 2:
            return c
    return min(r, _R_TILE_CANDIDATES[-1])


def _gelu_tanh(z):
    # 0.5 * z * (1 + tanh(sqrt(2/pi) * (z + 0.44715 * z^3)))
    inner = _SQRT_2_OVER_PI * (z + _GELU_CUBIC_COEF * (z * z * z))
    return 0.5 * z * (1.0 + jnp.tanh(inner))


def _deep_nn_kernel(params_ref, x_ref, o_ref, *, layer_sizes, use_shortcut):
    """Fused forward of all layers for one (features, r_tile, 128) block.

    params_ref : (n_params,) f32 in SMEM  -- all weights/biases, layer-major,
                 each layer laid out as w (in_f x out_f, row-major) then b.
    x_ref      : (in0, r_tile, 128) input block in VMEM (feature-major).
    o_ref      : (out_last, r_tile, 128) output block in VMEM.
    """
    n_layers = len(layer_sizes) - 1
    in0 = layer_sizes[0]
    out_last = layer_sizes[-1]
    r_tile = x_ref.shape[1]
    n_chunks = r_tile // _CHUNK_SUB

    @pl.loop(0, n_chunks)
    def _(ci):
        base = pl.multiple_of(ci * _CHUNK_SUB, _CHUNK_SUB)

        # h[k]: dense (8, 128) f32 slab of rows for feature k.
        h = [x_ref[k, pl.ds(base, _CHUNK_SUB), :].astype(jnp.float32)
             for k in range(in0)]

        off = 0
        for li in range(n_layers):
            in_f, out_f = layer_sizes[li], layer_sizes[li + 1]
            w_off, b_off = off, off + in_f * out_f
            new_h = []
            for o in range(out_f):
                # Scalar-broadcast FMAs from SMEM weights (VPU work, lane-dense).
                z = h[0] * params_ref[w_off + o]
                for k in range(1, in_f):
                    z = z + h[k] * params_ref[w_off + k * out_f + o]
                z = z + params_ref[b_off + o]
                g = _gelu_tanh(z)
                if use_shortcut and in_f == out_f:
                    new_h.append(h[o] + g)   # shortcut: x + layer(x)
                else:
                    new_h.append(g)
            h = new_h
            off = b_off + out_f

        for o in range(out_last):
            o_ref[o, pl.ds(base, _CHUNK_SUB), :] = h[o].astype(o_ref.dtype)


def example_deep_nn_forward(x: jax.Array, params, use_shortcut: bool = True) -> jax.Array:
    """Forward pass of ExampleDeepNeuralNetwork.

    x: (..., layer_sizes[0]); params: list of (w: (in_f, out_f), b: (out_f,)).
    Returns (..., layer_sizes[-1]).
    """
    lead_shape = x.shape[:-1]
    sizes = tuple([params[0][0].shape[0]] + [w.shape[1] for (w, _) in params])
    in0, out_f = sizes[0], sizes[-1]
    assert x.shape[-1] == in0

    x2d = x.reshape(-1, in0)
    n = x2d.shape[0]

    # Pad rows to a 1024-multiple, then fold rows -> (row_group, 128) and put
    # features in front (lane-dense, feature-major).  One tiny HBM pass.
    n_pad = _round_up(max(n, 1), _ROW_GROUP)
    r = n_pad // _LANE                      # row-groups of 128 rows; multiple of 8
    r_tile = _pick_r_tile(r)
    grid = (r // r_tile,)

    xp = jnp.pad(x2d, ((0, n_pad - n), (0, 0)))
    x_fm = xp.reshape(r, _LANE, in0).transpose(2, 0, 1)      # (in0, r, 128)

    # Pack all weights/biases into one flat f32 array -> SMEM scalars.
    flat_params = jnp.concatenate(
        [jnp.concatenate([w.reshape(-1), b.reshape(-1)]) for (w, b) in params]
    ).astype(jnp.float32)

    kernel = functools.partial(
        _deep_nn_kernel, layer_sizes=sizes, use_shortcut=use_shortcut
    )

    out_fm = pl.pallas_call(
        kernel,
        out_shape=jax.ShapeDtypeStruct((out_f, r, _LANE), x.dtype),
        grid_spec=pltpu.PrefetchScalarGridSpec(
            num_scalar_prefetch=0,
            grid=grid,
            in_specs=[
                pl.BlockSpec((flat_params.shape[0],), lambda i: (0,),
                             memory_space=pltpu.MemorySpace.SMEM),
                pl.BlockSpec((in0, r_tile, _LANE), lambda i: (0, i, 0)),
            ],
            out_specs=pl.BlockSpec((out_f, r_tile, _LANE), lambda i: (0, i, 0)),
        ),
        compiler_params=pltpu.CompilerParams(
            dimension_semantics=("parallel",),  # lets v7x split row tiles across its 2 TCs
        ),
    )(flat_params, x_fm)

    # (out_f, r, 128) -> (n_pad, out_f) -> strip padding -> original leading dims.
    out2d = jnp.moveaxis(out_fm, 0, -1).reshape(n_pad, out_f)[:n]
    return out2d.reshape(*lead_shape, out_f)


# ----------------------------- pure-JAX reference -----------------------------
def _ref_forward(x, params, use_shortcut):
    h = x
    for (w, b) in params:
        z = h @ w + b
        g = 0.5 * z * (1.0 + jnp.tanh(_SQRT_2_OVER_PI * (z + _GELU_CUBIC_COEF * z ** 3)))
        if use_shortcut and h.shape == g.shape:
            h = h + g
        else:
            h = g
    return h


if __name__ == "__main__":
    layer_sizes = [3, 3, 3, 3, 3, 1]
    n_layers = len(layer_sizes) - 1

    key = jax.random.PRNGKey(0)
    keys = jax.random.split(key, 1 + 2 * n_layers)

    params = []
    for li in range(n_layers):
        in_f, out_f = layer_sizes[li], layer_sizes[li + 1]
        w = jax.random.normal(keys[1 + 2 * li], (in_f, out_f), jnp.float32) / jnp.sqrt(
            jnp.asarray(in_f, jnp.float32)
        )
        b = jax.random.normal(keys[2 + 2 * li], (out_f,), jnp.float32) * 0.1
        params.append((w, b))

    ok = True

    # Small input consistent with the module: batch=2, seq=8, features=3.
    x_small = jax.random.normal(keys[0], (2, 8, 3), dtype=jnp.float32)
    for use_shortcut in (True, False):
        y = example_deep_nn_forward(x_small, params, use_shortcut=use_shortcut)
        jax.block_until_ready(y)
        y_ref = _ref_forward(x_small, params, use_shortcut)
        ok &= (y.shape == y_ref.shape) and (y.dtype == x_small.dtype)
        ok &= bool(jnp.allclose(y, y_ref, atol=1e-5, rtol=1e-5))

    # Ragged row count -> exercises padding + a multi-step ("parallel") grid.
    x_ragged = jax.random.normal(jax.random.PRNGKey(1), (4, 300, 3), dtype=jnp.float32)
    y = example_deep_nn_forward(x_ragged, params, use_shortcut=True)
    jax.block_until_ready(y)
    y_ref = _ref_forward(x_ragged, params, True)
    ok &= (y.shape == y_ref.shape)
    ok &= bool(jnp.allclose(y, y_ref, atol=1e-5, rtol=1e-5))

    assert ok
    print("KERNEL_OK")
</pallas_src>

<mosaic_0001>
module attributes {stable_mosaic.version = 11 : i64} {
  func.func @_deep_nn_kernel(%arg0: i32, %arg1: memref<52xf32, #tpu.memory_space<smem>>, %arg2: memref<3x8x128xf32, #tpu.memory_space<vmem>>, %arg3: memref<1x8x128xf32, #tpu.memory_space<vmem>>) attributes {dimension_semantics = [#tpu.dimension_semantics<parallel>], iteration_bounds = array<i64: 1>, scalar_prefetch = 0 : i64, scratch_operands = 0 : i64, tpu.core_type = #tpu.core_type<tc>, window_params = [{transform_indices = @transform_0, window_bounds = array<i64: 52>}, {transform_indices = @transform_1, window_bounds = array<i64: 3, 8, 128>}, {transform_indices = @transform_2, window_bounds = array<i64: 1, 8, 128>}]} {
    %c0_i32 = arith.constant 0 : i32
    %c1_i32 = arith.constant 1 : i32
    %0 = arith.muli %c0_i32, %c1_i32 : i32
    %c0_i32_0 = arith.constant 0 : i32
    %1 = arith.addi %c0_i32_0, %0 : i32
    %c8_i32 = arith.constant 8 : i32
    %2 = arith.muli %1, %c8_i32 : i32
    %3 = tpu.assume_multiple %2, 8 : i32
    %c0 = arith.constant 0 : index
    %4 = arith.index_cast %3 : i32 to index
    %c0_1 = arith.constant 0 : index
    %5 = vector.load %arg2[%c0, %4, %c0_1] : memref<3x8x128xf32, #tpu.memory_space<vmem>>, vector<1x8x128xf32>
    %6 = vector.shape_cast %5 : vector<1x8x128xf32> to vector<8x128xf32>
    %c1 = arith.constant 1 : index
    %7 = arith.index_cast %3 : i32 to index
    %c0_2 = arith.constant 0 : index
    %8 = vector.load %arg2[%c1, %7, %c0_2] : memref<3x8x128xf32, #tpu.memory_space<vmem>>, vector<1x8x128xf32>
    %9 = vector.shape_cast %8 : vector<1x8x128xf32> to vector<8x128xf32>
    %c2 = arith.constant 2 : index
    %10 = arith.index_cast %3 : i32 to index
    %c0_3 = arith.constant 0 : index
    %11 = vector.load %arg2[%c2, %10, %c0_3] : memref<3x8x128xf32, #tpu.memory_space<vmem>>, vector<1x8x128xf32>
    %12 = vector.shape_cast %11 : vector<1x8x128xf32> to vector<8x128xf32>
    %c0_4 = arith.constant 0 : index
    %13 = memref.load %arg1[%c0_4] : memref<52xf32, #tpu.memory_space<smem>>
    %14 = vector.broadcast %13 : f32 to vector<8x128xf32>
    %15 = arith.mulf %6, %14 : vector<8x128xf32>
    %c3 = arith.constant 3 : index
    %16 = memref.load %arg1[%c3] : memref<52xf32, #tpu.memory_space<smem>>
    %17 = vector.broadcast %16 : f32 to vector<8x128xf32>
    %18 = arith.mulf %9, %17 : vector<8x128xf32>
    %19 = arith.addf %15, %18 : vector<8x128xf32>
    %c6 = arith.constant 6 : index
    %20 = memref.load %arg1[%c6] : memref<52xf32, #tpu.memory_space<smem>>
    %21 = vector.broadcast %20 : f32 to vector<8x128xf32>
    %22 = arith.mulf %12, %21 : vector<8x128xf32>
    %23 = arith.addf %19, %22 : vector<8x128xf32>
    %c9 = arith.constant 9 : index
    %24 = memref.load %arg1[%c9] : memref<52xf32, #tpu.memory_space<smem>>
    %25 = vector.broadcast %24 : f32 to vector<8x128xf32>
    %26 = arith.addf %23, %25 : vector<8x128xf32>
    %27 = arith.mulf %26, %26 : vector<8x128xf32>
    %28 = arith.mulf %27, %26 : vector<8x128xf32>
    %cst = arith.constant 4.471500e-01 : f32
    %29 = vector.broadcast %cst : f32 to vector<8x128xf32>
    %30 = arith.mulf %29, %28 : vector<8x128xf32>
    %31 = arith.addf %26, %30 : vector<8x128xf32>
    %cst_5 = arith.constant 0.797884583 : f32
    %32 = vector.broadcast %cst_5 : f32 to vector<8x128xf32>
    %33 = arith.mulf %32, %31 : vector<8x128xf32>
    %cst_6 = arith.constant 5.000000e-01 : f32
    %34 = vector.broadcast %cst_6 : f32 to vector<8x128xf32>
    %35 = arith.mulf %34, %26 : vector<8x128xf32>
    %36 = math.tanh %33 : vector<8x128xf32>
    %cst_7 = arith.constant 1.000000e+00 : f32
    %37 = vector.broadcast %cst_7 : f32 to vector<8x128xf32>
    %38 = arith.addf %37, %36 : vector<8x128xf32>
    %39 = arith.mulf %35, %38 : vector<8x128xf32>
    %40 = arith.addf %6, %39 : vector<8x128xf32>
    %c1_8 = arith.constant 1 : index
    %41 = memref.load %arg1[%c1_8] : memref<52xf32, #tpu.memory_space<smem>>
    %42 = vector.broadcast %41 : f32 to vector<8x128xf32>
    %43 = arith.mulf %6, %42 : vector<8x128xf32>
    %c4 = arith.constant 4 : index
    %44 = memref.load %arg1[%c4] : memref<52xf32, #tpu.memory_space<smem>>
    %45 = vector.broadcast %44 : f32 to vector<8x128xf32>
    %46 = arith.mulf %9, %45 : vector<8x128xf32>
    %47 = arith.addf %43, %46 : vector<8x128xf32>
    %c7 = arith.constant 7 : index
    %48 = memref.load %arg1[%c7] : memref<52xf32, #tpu.memory_space<smem>>
    %49 = vector.broadcast %48 : f32 to vector<8x128xf32>
    %50 = arith.mulf %12, %49 : vector<8x128xf32>
    %51 = arith.addf %47, %50 : vector<8x128xf32>
    %c10 = arith.constant 10 : index
    %52 = memref.load %arg1[%c10] : memref<52xf32, #tpu.memory_space<smem>>
    %53 = vector.broadcast %52 : f32 to vector<8x128xf32>
    %54 = arith.addf %51, %53 : vector<8x128xf32>
    %55 = arith.mulf %54, %54 : vector<8x128xf32>
    %56 = arith.mulf %55, %54 : vector<8x128xf32>
    %cst_9 = arith.constant 4.471500e-01 : f32
    %57 = vector.broadcast %cst_9 : f32 to vector<8x128xf32>
    %58 = arith.mulf %57, %56 : vector<8x128xf32>
    %59 = arith.addf %54, %58 : vector<8x128xf32>
    %cst_10 = arith.constant 0.797884583 : f32
    %60 = vector.broadcast %cst_10 : f32 to vector<8x128xf32>
    %61 = arith.mulf %60, %59 : vector<8x128xf32>
    %cst_11 = arith.constant 5.000000e-01 : f32
    %62 = vector.broadcast %cst_11 : f32 to vector<8x128xf32>
    %63 = arith.mulf %62, %54 : vector<8x128xf32>
    %64 = math.tanh %61 : vector<8x128xf32>
    %cst_12 = arith.constant 1.000000e+00 : f32
    %65 = vector.broadcast %cst_12 : f32 to vector<8x128xf32>
    %66 = arith.addf %65, %64 : vector<8x128xf32>
    %67 = arith.mulf %63, %66 : vector<8x128xf32>
    %68 = arith.addf %9, %67 : vector<8x128xf32>
    %c2_13 = arith.constant 2 : index
    %69 = memref.load %arg1[%c2_13] : memref<52xf32, #tpu.memory_space<smem>>
    %70 = vector.broadcast %69 : f32 to vector<8x128xf32>
    %71 = arith.mulf %6, %70 : vector<8x128xf32>
    %c5 = arith.constant 5 : index
    %72 = memref.load %arg1[%c5] : memref<52xf32, #tpu.memory_space<smem>>
    %73 = vector.broadcast %72 : f32 to vector<8x128xf32>
    %74 = arith.mulf %9, %73 : vector<8x128xf32>
    %75 = arith.addf %71, %74 : vector<8x128xf32>
    %c8 = arith.constant 8 : index
    %76 = memref.load %arg1[%c8] : memref<52xf32, #tpu.memory_space<smem>>
    %77 = vector.broadcast %76 : f32 to vector<8x128xf32>
    %78 = arith.mulf %12, %77 : vector<8x128xf32>
    %79 = arith.addf %75, %78 : vector<8x128xf32>
    %c11 = arith.constant 11 : index
    %80 = memref.load %arg1[%c11] : memref<52xf32, #tpu.memory_space<smem>>
    %81 = vector.broadcast %80 : f32 to vector<8x128xf32>
    %82 = arith.addf %79, %81 : vector<8x128xf32>
    %83 = arith.mulf %82, %82 : vector<8x128xf32>
    %84 = arith.mulf %83, %82 : vector<8x128xf32>
    %cst_14 = arith.constant 4.471500e-01 : f32
    %85 = vector.broadcast %cst_14 : f32 to vector<8x128xf32>
    %86 = arith.mulf %85, %84 : vector<8x128xf32>
    %87 = arith.addf %82, %86 : vector<8x128xf32>
    %cst_15 = arith.constant 0.797884583 : f32
    %88 = vector.broadcast %cst_15 : f32 to vector<8x128xf32>
    %89 = arith.mulf %88, %87 : vector<8x128xf32>
    %cst_16 = arith.constant 5.000000e-01 : f32
    %90 = vector.broadcast %cst_16 : f32 to vector<8x128xf32>
    %91 = arith.mulf %90, %82 : vector<8x128xf32>
    %92 = math.tanh %89 : vector<8x128xf32>
    %cst_17 = arith.constant 1.000000e+00 : f32
    %93 = vector.broadcast %cst_17 : f32 to vector<8x128xf32>
    %94 = arith.addf %93, %92 : vector<8x128xf32>
    %95 = arith.mulf %91, %94 : vector<8x128xf32>
    %96 = arith.addf %12, %95 : vector<8x128xf32>
    %c12 = arith.constant 12 : index
    %97 = memref.load %arg1[%c12] : memref<52xf32, #tpu.memory_space<smem>>
    %98 = vector.broadcast %97 : f32 to vector<8x128xf32>
    %99 = arith.mulf %40, %98 : vector<8x128xf32>
    %c15 = arith.constant 15 : index
    %100 = memref.load %arg1[%c15] : memref<52xf32, #tpu.memory_space<smem>>
    %101 = vector.broadcast %100 : f32 to vector<8x128xf32>
    %102 = arith.mulf %68, %101 : vector<8x128xf32>
    %103 = arith.addf %99, %102 : vector<8x128xf32>
    %c18 = arith.constant 18 : index
    %104 = memref.load %arg1[%c18] : memref<52xf32, #tpu.memory_space<smem>>
    %105 = vector.broadcast %104 : f32 to vector<8x128xf32>
    %106 = arith.mulf %96, %105 : vector<8x128xf32>
    %107 = arith.addf %103, %106 : vector<8x128xf32>
    %c21 = arith.constant 21 : index
    %108 = memref.load %arg1[%c21] : memref<52xf32, #tpu.memory_space<smem>>
    %109 = vector.broadcast %108 : f32 to vector<8x128xf32>
    %110 = arith.addf %107, %109 : vector<8x128xf32>
    %111 = arith.mulf %110, %110 : vector<8x128xf32>
    %112 = arith.mulf %111, %110 : vector<8x128xf32>
    %cst_18 = arith.constant 4.471500e-01 : f32
    %113 = vector.broadcast %cst_18 : f32 to vector<8x128xf32>
    %114 = arith.mulf %113, %112 : vector<8x128xf32>
    %115 = arith.addf %110, %114 : vector<8x128xf32>
    %cst_19 = arith.constant 0.797884583 : f32
    %116 = vector.broadcast %cst_19 : f32 to vector<8x128xf32>
    %117 = arith.mulf %116, %115 : vector<8x128xf32>
    %cst_20 = arith.constant 5.000000e-01 : f32
    %118 = vector.broadcast %cst_20 : f32 to vector<8x128xf32>
    %119 = arith.mulf %118, %110 : vector<8x128xf32>
    %120 = math.tanh %117 : vector<8x128xf32>
    %cst_21 = arith.constant 1.000000e+00 : f32
    %121 = vector.broadcast %cst_21 : f32 to vector<8x128xf32>
    %122 = arith.addf %121, %120 : vector<8x128xf32>
    %123 = arith.mulf %119, %122 : vector<8x128xf32>
    %124 = arith.addf %40, %123 : vector<8x128xf32>
    %c13 = arith.constant 13 : index
    %125 = memref.load %arg1[%c13] : memref<52xf32, #tpu.memory_space<smem>>
    %126 = vector.broadcast %125 : f32 to vector<8x128xf32>
    %127 = arith.mulf %40, %126 : vector<8x128xf32>
    %c16 = arith.constant 16 : index
    %128 = memref.load %arg1[%c16] : memref<52xf32, #tpu.memory_space<smem>>
    %129 = vector.broadcast %128 : f32 to vector<8x128xf32>
    %130 = arith.mulf %68, %129 : vector<8x128xf32>
    %131 = arith.addf %127, %130 : vector<8x128xf32>
    %c19 = arith.constant 19 : index
    %132 = memref.load %arg1[%c19] : memref<52xf32, #tpu.memory_space<smem>>
    %133 = vector.broadcast %132 : f32 to vector<8x128xf32>
    %134 = arith.mulf %96, %133 : vector<8x128xf32>
    %135 = arith.addf %131, %134 : vector<8x128xf32>
    %c22 = arith.constant 22 : index
    %136 = memref.load %arg1[%c22] : memref<52xf32, #tpu.memory_space<smem>>
    %137 = vector.broadcast %136 : f32 to vector<8x128xf32>
    %138 = arith.addf %135, %137 : vector<8x128xf32>
    %139 = arith.mulf %138, %138 : vector<8x128xf32>
    %140 = arith.mulf %139, %138 : vector<8x128xf32>
    %cst_22 = arith.constant 4.471500e-01 : f32
    %141 = vector.broadcast %cst_22 : f32 to vector<8x128xf32>
    %142 = arith.mulf %141, %140 : vector<8x128xf32>
    %143 = arith.addf %138, %142 : vector<8x128xf32>
    %cst_23 = arith.constant 0.797884583 : f32
    %144 = vector.broadcast %cst_23 : f32 to vector<8x128xf32>
    %145 = arith.mulf %144, %143 : vector<8x128xf32>
    %cst_24 = arith.constant 5.000000e-01 : f32
    %146 = vector.broadcast %cst_24 : f32 to vector<8x128xf32>
    %147 = arith.mulf %146, %138 : vector<8x128xf32>
    %148 = math.tanh %145 : vector<8x128xf32>
    %cst_25 = arith.constant 1.000000e+00 : f32
    %149 = vector.broadcast %cst_25 : f32 to vector<8x128xf32>
    %150 = arith.addf %149, %148 : vector<8x128xf32>
    %151 = arith.mulf %147, %150 : vector<8x128xf32>
    %152 = arith.addf %68, %151 : vector<8x128xf32>
    %c14 = arith.constant 14 : index
    %153 = memref.load %arg1[%c14] : memref<52xf32, #tpu.memory_space<smem>>
    %154 = vector.broadcast %153 : f32 to vector<8x128xf32>
    %155 = arith.mulf %40, %154 : vector<8x128xf32>
    %c17 = arith.constant 17 : index
    %156 = memref.load %arg1[%c17] : memref<52xf32, #tpu.memory_space<smem>>
    %157 = vector.broadcast %156 : f32 to vector<8x128xf32>
    %158 = arith.mulf %68, %157 : vector<8x128xf32>
    %159 = arith.addf %155, %158 : vector<8x128xf32>
    %c20 = arith.constant 20 : index
    %160 = memref.load %arg1[%c20] : memref<52xf32, #tpu.memory_space<smem>>
    %161 = vector.broadcast %160 : f32 to vector<8x128xf32>
    %162 = arith.mulf %96, %161 : vector<8x128xf32>
    %163 = arith.addf %159, %162 : vector<8x128xf32>
    %c23 = arith.constant 23 : index
    %164 = memref.load %arg1[%c23] : memref<52xf32, #tpu.memory_space<smem>>
    %165 = vector.broadcast %164 : f32 to vector<8x128xf32>
    %166 = arith.addf %163, %165 : vector<8x128xf32>
    %167 = arith.mulf %166, %166 : vector<8x128xf32>
    %168 = arith.mulf %167, %166 : vector<8x128xf32>
    %cst_26 = arith.constant 4.471500e-01 : f32
    %169 = vector.broadcast %cst_26 : f32 to vector<8x128xf32>
    %170 = arith.mulf %169, %168 : vector<8x128xf32>
    %171 = arith.addf %166, %170 : vector<8x128xf32>
    %cst_27 = arith.constant 0.797884583 : f32
    %172 = vector.broadcast %cst_27 : f32 to vector<8x128xf32>
    %173 = arith.mulf %172, %171 : vector<8x128xf32>
    %cst_28 = arith.constant 5.000000e-01 : f32
    %174 = vector.broadcast %cst_28 : f32 to vector<8x128xf32>
    %175 = arith.mulf %174, %166 : vector<8x128xf32>
    %176 = math.tanh %173 : vector<8x128xf32>
    %cst_29 = arith.constant 1.000000e+00 : f32
    %177 = vector.broadcast %cst_29 : f32 to vector<8x128xf32>
    %178 = arith.addf %177, %176 : vector<8x128xf32>
    %179 = arith.mulf %175, %178 : vector<8x128xf32>
    %180 = arith.addf %96, %179 : vector<8x128xf32>
    %c24 = arith.constant 24 : index
    %181 = memref.load %arg1[%c24] : memref<52xf32, #tpu.memory_space<smem>>
    %182 = vector.broadcast %181 : f32 to vector<8x128xf32>
    %183 = arith.mulf %124, %182 : vector<8x128xf32>
    %c27 = arith.constant 27 : index
    %184 = memref.load %arg1[%c27] : memref<52xf32, #tpu.memory_space<smem>>
    %185 = vector.broadcast %184 : f32 to vector<8x128xf32>
    %186 = arith.mulf %152, %185 : vector<8x128xf32>
    %187 = arith.addf %183, %186 : vector<8x128xf32>
    %c30 = arith.constant 30 : index
    %188 = memref.load %arg1[%c30] : memref<52xf32, #tpu.memory_space<smem>>
    %189 = vector.broadcast %188 : f32 to vector<8x128xf32>
    %190 = arith.mulf %180, %189 : vector<8x128xf32>
    %191 = arith.addf %187, %190 : vector<8x128xf32>
    %c33 = arith.constant 33 : index
    %192 = memref.load %arg1[%c33] : memref<52xf32, #tpu.memory_space<smem>>
    %193 = vector.broadcast %192 : f32 to vector<8x128xf32>
    %194 = arith.addf %191, %193 : vector<8x128xf32>
    %195 = arith.mulf %194, %194 : vector<8x128xf32>
    %196 = arith.mulf %195, %194 : vector<8x128xf32>
    %cst_30 = arith.constant 4.471500e-01 : f32
    %197 = vector.broadcast %cst_30 : f32 to vector<8x128xf32>
    %198 = arith.mulf %197, %196 : vector<8x128xf32>
    %199 = arith.addf %194, %198 : vector<8x128xf32>
    %cst_31 = arith.constant 0.797884583 : f32
    %200 = vector.broadcast %cst_31 : f32 to vector<8x128xf32>
    %201 = arith.mulf %200, %199 : vector<8x128xf32>
    %cst_32 = arith.constant 5.000000e-01 : f32
    %202 = vector.broadcast %cst_32 : f32 to vector<8x128xf32>
    %203 = arith.mulf %202, %194 : vector<8x128xf32>
    %204 = math.tanh %201 : vector<8x128xf32>
    %cst_33 = arith.constant 1.000000e+00 : f32
    %205 = vector.broadcast %cst_33 : f32 to vector<8x128xf32>
    %206 = arith.addf %205, %204 : vector<8x128xf32>
    %207 = arith.mulf %203, %206 : vector<8x128xf32>
    %208 = arith.addf %124, %207 : vector<8x128xf32>
    %c25 = arith.constant 25 : index
    %209 = memref.load %arg1[%c25] : memref<52xf32, #tpu.memory_space<smem>>
    %210 = vector.broadcast %209 : f32 to vector<8x128xf32>
    %211 = arith.mulf %124, %210 : vector<8x128xf32>
    %c28 = arith.constant 28 : index
    %212 = memref.load %arg1[%c28] : memref<52xf32, #tpu.memory_space<smem>>
    %213 = vector.broadcast %212 : f32 to vector<8x128xf32>
    %214 = arith.mulf %152, %213 : vector<8x128xf32>
    %215 = arith.addf %211, %214 : vector<8x128xf32>
    %c31 = arith.constant 31 : index
    %216 = memref.load %arg1[%c31] : memref<52xf32, #tpu.memory_space<smem>>
    %217 = vector.broadcast %216 : f32 to vector<8x128xf32>
    %218 = arith.mulf %180, %217 : vector<8x128xf32>
    %219 = arith.addf %215, %218 : vector<8x128xf32>
    %c34 = arith.constant 34 : index
    %220 = memref.load %arg1[%c34] : memref<52xf32, #tpu.memory_space<smem>>
    %221 = vector.broadcast %220 : f32 to vector<8x128xf32>
    %222 = arith.addf %219, %221 : vector<8x128xf32>
    %223 = arith.mulf %222, %222 : vector<8x128xf32>
    %224 = arith.mulf %223, %222 : vector<8x128xf32>
    %cst_34 = arith.constant 4.471500e-01 : f32
    %225 = vector.broadcast %cst_34 : f32 to vector<8x128xf32>
    %226 = arith.mulf %225, %224 : vector<8x128xf32>
    %227 = arith.addf %222, %226 : vector<8x128xf32>
    %cst_35 = arith.constant 0.797884583 : f32
    %228 = vector.broadcast %cst_35 : f32 to vector<8x128xf32>
    %229 = arith.mulf %228, %227 : vector<8x128xf32>
    %cst_36 = arith.constant 5.000000e-01 : f32
    %230 = vector.broadcast %cst_36 : f32 to vector<8x128xf32>
    %231 = arith.mulf %230, %222 : vector<8x128xf32>
    %232 = math.tanh %229 : vector<8x128xf32>
    %cst_37 = arith.constant 1.000000e+00 : f32
    %233 = vector.broadcast %cst_37 : f32 to vector<8x128xf32>
    %234 = arith.addf %233, %232 : vector<8x128xf32>
    %235 = arith.mulf %231, %234 : vector<8x128xf32>
    %236 = arith.addf %152, %235 : vector<8x128xf32>
    %c26 = arith.constant 26 : index
    %237 = memref.load %arg1[%c26] : memref<52xf32, #tpu.memory_space<smem>>
    %238 = vector.broadcast %237 : f32 to vector<8x128xf32>
    %239 = arith.mulf %124, %238 : vector<8x128xf32>
    %c29 = arith.constant 29 : index
    %240 = memref.load %arg1[%c29] : memref<52xf32, #tpu.memory_space<smem>>
    %241 = vector.broadcast %240 : f32 to vector<8x128xf32>
    %242 = arith.mulf %152, %241 : vector<8x128xf32>
    %243 = arith.addf %239, %242 : vector<8x128xf32>
    %c32 = arith.constant 32 : index
    %244 = memref.load %arg1[%c32] : memref<52xf32, #tpu.memory_space<smem>>
    %245 = vector.broadcast %244 : f32 to vector<8x128xf32>
    %246 = arith.mulf %180, %245 : vector<8x128xf32>
    %247 = arith.addf %243, %246 : vector<8x128xf32>
    %c35 = arith.constant 35 : index
    %248 = memref.load %arg1[%c35] : memref<52xf32, #tpu.memory_space<smem>>
    %249 = vector.broadcast %248 : f32 to vector<8x128xf32>
    %250 = arith.addf %247, %249 : vector<8x128xf32>
    %251 = arith.mulf %250, %250 : vector<8x128xf32>
    %252 = arith.mulf %251, %250 : vector<8x128xf32>
    %cst_38 = arith.constant 4.471500e-01 : f32
    %253 = vector.broadcast %cst_38 : f32 to vector<8x128xf32>
    %254 = arith.mulf %253, %252 : vector<8x128xf32>
    %255 = arith.addf %250, %254 : vector<8x128xf32>
    %cst_39 = arith.constant 0.797884583 : f32
    %256 = vector.broadcast %cst_39 : f32 to vector<8x128xf32>
    %257 = arith.mulf %256, %255 : vector<8x128xf32>
    %cst_40 = arith.constant 5.000000e-01 : f32
    %258 = vector.broadcast %cst_40 : f32 to vector<8x128xf32>
    %259 = arith.mulf %258, %250 : vector<8x128xf32>
    %260 = math.tanh %257 : vector<8x128xf32>
    %cst_41 = arith.constant 1.000000e+00 : f32
    %261 = vector.broadcast %cst_41 : f32 to vector<8x128xf32>
    %262 = arith.addf %261, %260 : vector<8x128xf32>
    %263 = arith.mulf %259, %262 : vector<8x128xf32>
    %264 = arith.addf %180, %263 : vector<8x128xf32>
    %c36 = arith.constant 36 : index
    %265 = memref.load %arg1[%c36] : memref<52xf32, #tpu.memory_space<smem>>
    %266 = vector.broadcast %265 : f32 to vector<8x128xf32>
    %267 = arith.mulf %208, %266 : vector<8x128xf32>
    %c39 = arith.constant 39 : index
    %268 = memref.load %arg1[%c39] : memref<52xf32, #tpu.memory_space<smem>>
    %269 = vector.broadcast %268 : f32 to vector<8x128xf32>
    %270 = arith.mulf %236, %269 : vector<8x128xf32>
    %271 = arith.addf %267, %270 : vector<8x128xf32>
    %c42 = arith.constant 42 : index
    %272 = memref.load %arg1[%c42] : memref<52xf32, #tpu.memory_space<smem>>
    %273 = vector.broadcast %272 : f32 to vector<8x128xf32>
    %274 = arith.mulf %264, %273 : vector<8x128xf32>
    %275 = arith.addf %271, %274 : vector<8x128xf32>
    %c45 = arith.constant 45 : index
    %276 = memref.load %arg1[%c45] : memref<52xf32, #tpu.memory_space<smem>>
    %277 = vector.broadcast %276 : f32 to vector<8x128xf32>
    %278 = arith.addf %275, %277 : vector<8x128xf32>
    %279 = arith.mulf %278, %278 : vector<8x128xf32>
    %280 = arith.mulf %279, %278 : vector<8x128xf32>
    %cst_42 = arith.constant 4.471500e-01 : f32
    %281 = vector.broadcast %cst_42 : f32 to vector<8x128xf32>
    %282 = arith.mulf %281, %280 : vector<8x128xf32>
    %283 = arith.addf %278, %282 : vector<8x128xf32>
    %cst_43 = arith.constant 0.797884583 : f32
    %284 = vector.broadcast %cst_43 : f32 to vector<8x128xf32>
    %285 = arith.mulf %284, %283 : vector<8x128xf32>
    %cst_44 = arith.constant 5.000000e-01 : f32
    %286 = vector.broadcast %cst_44 : f32 to vector<8x128xf32>
    %287 = arith.mulf %286, %278 : vector<8x128xf32>
    %288 = math.tanh %285 : vector<8x128xf32>
    %cst_45 = arith.constant 1.000000e+00 : f32
    %289 = vector.broadcast %cst_45 : f32 to vector<8x128xf32>
    %290 = arith.addf %289, %288 : vector<8x128xf32>
    %291 = arith.mulf %287, %290 : vector<8x128xf32>
    %292 = arith.addf %208, %291 : vector<8x128xf32>
    %c37 = arith.constant 37 : index
    %293 = memref.load %arg1[%c37] : memref<52xf32, #tpu.memory_space<smem>>
    %294 = vector.broadcast %293 : f32 to vector<8x128xf32>
    %295 = arith.mulf %208, %294 : vector<8x128xf32>
    %c40 = arith.constant 40 : index
    %296 = memref.load %arg1[%c40] : memref<52xf32, #tpu.memory_space<smem>>
    %297 = vector.broadcast %296 : f32 to vector<8x128xf32>
    %298 = arith.mulf %236, %297 : vector<8x128xf32>
    %299 = arith.addf %295, %298 : vector<8x128xf32>
    %c43 = arith.constant 43 : index
    %300 = memref.load %arg1[%c43] : memref<52xf32, #tpu.memory_space<smem>>
    %301 = vector.broadcast %300 : f32 to vector<8x128xf32>
    %302 = arith.mulf %264, %301 : vector<8x128xf32>
    %303 = arith.addf %299, %302 : vector<8x128xf32>
    %c46 = arith.constant 46 : index
    %304 = memref.load %arg1[%c46] : memref<52xf32, #tpu.memory_space<smem>>
    %305 = vector.broadcast %304 : f32 to vector<8x128xf32>
    %306 = arith.addf %303, %305 : vector<8x128xf32>
    %307 = arith.mulf %306, %306 : vector<8x128xf32>
    %308 = arith.mulf %307, %306 : vector<8x128xf32>
    %cst_46 = arith.constant 4.471500e-01 : f32
    %309 = vector.broadcast %cst_46 : f32 to vector<8x128xf32>
    %310 = arith.mulf %309, %308 : vector<8x128xf32>
    %311 = arith.addf %306, %310 : vector<8x128xf32>
    %cst_47 = arith.constant 0.797884583 : f32
    %312 = vector.broadcast %cst_47 : f32 to vector<8x128xf32>
    %313 = arith.mulf %312, %311 : vector<8x128xf32>
    %cst_48 = arith.constant 5.000000e-01 : f32
    %314 = vector.broadcast %cst_48 : f32 to vector<8x128xf32>
    %315 = arith.mulf %314, %306 : vector<8x128xf32>
    %316 = math.tanh %313 : vector<8x128xf32>
    %cst_49 = arith.constant 1.000000e+00 : f32
    %317 = vector.broadcast %cst_49 : f32 to vector<8x128xf32>
    %318 = arith.addf %317, %316 : vector<8x128xf32>
    %319 = arith.mulf %315, %318 : vector<8x128xf32>
    %320 = arith.addf %236, %319 : vector<8x128xf32>
    %c38 = arith.constant 38 : index
    %321 = memref.load %arg1[%c38] : memref<52xf32, #tpu.memory_space<smem>>
    %322 = vector.broadcast %321 : f32 to vector<8x128xf32>
    %323 = arith.mulf %208, %322 : vector<8x128xf32>
    %c41 = arith.constant 41 : index
    %324 = memref.load %arg1[%c41] : memref<52xf32, #tpu.memory_space<smem>>
    %325 = vector.broadcast %324 : f32 to vector<8x128xf32>
    %326 = arith.mulf %236, %325 : vector<8x128xf32>
    %327 = arith.addf %323, %326 : vector<8x128xf32>
    %c44 = arith.constant 44 : index
    %328 = memref.load %arg1[%c44] : memref<52xf32, #tpu.memory_space<smem>>
    %329 = vector.broadcast %328 : f32 to vector<8x128xf32>
    %330 = arith.mulf %264, %329 : vector<8x128xf32>
    %331 = arith.addf %327, %330 : vector<8x128xf32>
    %c47 = arith.constant 47 : index
    %332 = memref.load %arg1[%c47] : memref<52xf32, #tpu.memory_space<smem>>
    %333 = vector.broadcast %332 : f32 to vector<8x128xf32>
    %334 = arith.addf %331, %333 : vector<8x128xf32>
    %335 = arith.mulf %334, %334 : vector<8x128xf32>
    %336 = arith.mulf %335, %334 : vector<8x128xf32>
    %cst_50 = arith.constant 4.471500e-01 : f32
    %337 = vector.broadcast %cst_50 : f32 to vector<8x128xf32>
    %338 = arith.mulf %337, %336 : vector<8x128xf32>
    %339 = arith.addf %334, %338 : vector<8x128xf32>
    %cst_51 = arith.constant 0.797884583 : f32
    %340 = vector.broadcast %cst_51 : f32 to vector<8x128xf32>
    %341 = arith.mulf %340, %339 : vector<8x128xf32>
    %cst_52 = arith.constant 5.000000e-01 : f32
    %342 = vector.broadcast %cst_52 : f32 to vector<8x128xf32>
    %343 = arith.mulf %342, %334 : vector<8x128xf32>
    %344 = math.tanh %341 : vector<8x128xf32>
    %cst_53 = arith.constant 1.000000e+00 : f32
    %345 = vector.broadcast %cst_53 : f32 to vector<8x128xf32>
    %346 = arith.addf %345, %344 : vector<8x128xf32>
    %347 = arith.mulf %343, %346 : vector<8x128xf32>
    %348 = arith.addf %264, %347 : vector<8x128xf32>
    %c48 = arith.constant 48 : index
    %349 = memref.load %arg1[%c48] : memref<52xf32, #tpu.memory_space<smem>>
    %350 = vector.broadcast %349 : f32 to vector<8x128xf32>
    %351 = arith.mulf %292, %350 : vector<8x128xf32>
    %c49 = arith.constant 49 : index
    %352 = memref.load %arg1[%c49] : memref<52xf32, #tpu.memory_space<smem>>
    %353 = vector.broadcast %352 : f32 to vector<8x128xf32>
    %354 = arith.mulf %320, %353 : vector<8x128xf32>
    %355 = arith.addf %351, %354 : vector<8x128xf32>
    %c50 = arith.constant 50 : index
    %356 = memref.load %arg1[%c50] : memref<52xf32, #tpu.memory_space<smem>>
    %357 = vector.broadcast %356 : f32 to vector<8x128xf32>
    %358 = arith.mulf %348, %357 : vector<8x128xf32>
    %359 = arith.addf %355, %358 : vector<8x128xf32>
    %c51 = arith.constant 51 : index
    %360 = memref.load %arg1[%c51] : memref<52xf32, #tpu.memory_space<smem>>
    %361 = vector.broadcast %360 : f32 to vector<8x128xf32>
    %362 = arith.addf %359, %361 : vector<8x128xf32>
    %363 = arith.mulf %362, %362 : vector<8x128xf32>
    %364 = arith.mulf %363, %362 : vector<8x128xf32>
    %cst_54 = arith.constant 4.471500e-01 : f32
    %365 = vector.broadcast %cst_54 : f32 to vector<8x128xf32>
    %366 = arith.mulf %365, %364 : vector<8x128xf32>
    %367 = arith.addf %362, %366 : vector<8x128xf32>
    %cst_55 = arith.constant 0.797884583 : f32
    %368 = vector.broadcast %cst_55 : f32 to vector<8x128xf32>
    %369 = arith.mulf %368, %367 : vector<8x128xf32>
    %cst_56 = arith.constant 5.000000e-01 : f32
    %370 = vector.broadcast %cst_56 : f32 to vector<8x128xf32>
    %371 = arith.mulf %370, %362 : vector<8x128xf32>
    %372 = math.tanh %369 : vector<8x128xf32>
    %cst_57 = arith.constant 1.000000e+00 : f32
    %373 = vector.broadcast %cst_57 : f32 to vector<8x128xf32>
    %374 = arith.addf %373, %372 : vector<8x128xf32>
    %375 = arith.mulf %371, %374 : vector<8x128xf32>
    %c0_58 = arith.constant 0 : index
    %376 = arith.index_cast %3 : i32 to index
    %c0_59 = arith.constant 0 : index
    %377 = vector.load %arg3[%c0_58, %376, %c0_59] : memref<1x8x128xf32, #tpu.memory_space<vmem>>, vector<1x8x128xf32>
    %378 = vector.shape_cast %377 : vector<1x8x128xf32> to vector<8x128xf32>
    %379 = vector.shape_cast %375 : vector<8x128xf32> to vector<1x8x128xf32>
    tpu.vector_store %arg3[%c0_58, %376, %c0_59], %379 {strides = array<i32>} : memref<1x8x128xf32, #tpu.memory_space<vmem>>, vector<1x8x128xf32>,
    %c1_i32_60 = arith.constant 1 : i32
    return
  }
  func.func @transform_0(%arg0: i32) -> i32 {
    %c0_i32 = arith.constant 0 : i32
    %c0_i32_0 = arith.constant 0 : i32
    return %c0_i32 : i32
  }
  func.func @transform_1(%arg0: i32) -> (i32, i32, i32) {
    %c0_i32 = arith.constant 0 : i32
    %c0_i32_0 = arith.constant 0 : i32
    %c0_i32_1 = arith.constant 0 : i32
    return %c0_i32, %arg0, %c0_i32_0 : i32, i32, i32
  }
  func.func @transform_2(%arg0: i32) -> (i32, i32, i32) {
    %c0_i32 = arith.constant 0 : i32
    %c0_i32_0 = arith.constant 0 : i32
    %c0_i32_1 = arith.constant 0 : i32
    return %c0_i32, %arg0, %c0_i32_0 : i32, i32, i32
  }
}

</mosaic_0001>

<llo_original>
// kernel: tpu_custom_call.1
$region0: #{tpu_custom_call.1}
  #allocation0 [shape = 'u32[]', space=smem, size = 0x4, offset = 0x4, fixed_abs, tag = 'smem constant byte address 0x4 - core index']
  #allocation1 [shape = 'u32[72,128]{1,0:T(1,128)}', space=vmem, size = 0x9000, scoped, tag = 'internal scratch']
  %s0 = inlined_call_operand.hbm [shape: f32[52], index: 0, kind: input, shape index: {}]
  %s1 = inlined_call_operand.hbm [shape: f32[3,8,128], index: 1, kind: input, shape index: {}]
  %s2 = inlined_call_operand.hbm [shape: f32[1,8,128], index: 2, kind: output, shape index: {}]
  %s3 = sld [smem:[#allocation0]]
  $region26: #{tpu_custom_call.1} parent=0
    _
  %s5 = ssub.s32 1, %s3
  %s6 = scalar_select 0, %s5, %s3
  $region1: #{tpu_custom_call.1} parent=0
    #allocation2 [shape = 'u8[512]{0}', space=smem, size = 0x200, scoped, tag = 'input window, operand 0, single buffered']
    #allocation3 [shape = 's32[1]{0}', space=sflag, size = 0x4, scoped, tag = 'scoped memory for tpu_custom_call.1']
    #allocation4 [shape = 's32[1]{0}', space=sflag, size = 0x4, scoped, tag = 'scoped memory for tpu_custom_call.1']
    #allocation5 [shape = 's32[1]{0}', space=sflag, size = 0x4, scoped, tag = 'scoped memory for tpu_custom_call.1']
    #allocation6 [shape = 'u8[12288]{0}', space=vmem, size = 0x3000, scoped, tag = 'input window, operand 1, single buffered']
    #allocation7 [shape = 'u8[4096]{0}', space=vmem, size = 0x1000, scoped, tag = 'output window, operand 0, single buffered']
    %7 = vsyncpa [#allocation5], 0
    %8 = vsyncpa [#allocation3], 0
    %9 = vsyncpa [#allocation4], 0
    // Predicated region
    $region2: #{tpu_custom_call.1} parent=1 // pred_check
      _
    $region3: #{tpu_custom_call.1} parent=1 // pred_check_branch
      %11 = sbr.rel (0) target = $region5
    $region4: #{tpu_custom_call.1} parent=1 // pred_region
      %13 = vsyncadd [#allocation5], 0
      %s15 = sshll.u32 %s0, 4
      %s16 = int_to_ptr.hbm [resolvable:$true] %s15
      %18 = dma.hbm_to_smem %s16, 16, [#allocation2], [#allocation5]
    $region5: #{tpu_custom_call.1} parent=1 // pred_fallthru
      _
    // Predicated region
    $region6: #{tpu_custom_call.1} parent=1 // pred_check
      _
    $region7: #{tpu_custom_call.1} parent=1 // pred_check_branch
      %20 = sbr.rel (0) target = $region9
    $region8: #{tpu_custom_call.1} parent=1 // pred_region
      %22 = vsyncadd [#allocation3], 0
      %s23 = sshll.u32 %s1, 4
      %s24 = int_to_ptr.hbm [resolvable:$true] %s23
      %s25 = sshll.u32 [#allocation6], 4
      %s26 = int_to_ptr.vmem [resolvable:$true] %s25
      %31 = dma.hbm_to_vmem [thread:$0]  %s24, 384, %s26, [#allocation3], 128, 128, 8
    $region9: #{tpu_custom_call.1} parent=1 // pred_fallthru
      _
    // Predicated region
    $region10: #{tpu_custom_call.1} parent=1 // pred_check
      _
    $region11: #{tpu_custom_call.1} parent=1 // pred_check_branch
      %33 = sbr.rel (0) target = $region13
    $region12: #{tpu_custom_call.1} parent=1 // pred_region
      %35 = dma.done [#allocation5], 16
    $region13: #{tpu_custom_call.1} parent=1 // pred_fallthru
      _
    // Predicated region
    $region14: #{tpu_custom_call.1} parent=1 // pred_check
      _
    $region15: #{tpu_custom_call.1} parent=1 // pred_check_branch
      %37 = sbr.rel (0) target = $region17
    $region16: #{tpu_custom_call.1} parent=1 // pred_region
      %39 = dma.done [#allocation3], 384
    $region17: #{tpu_custom_call.1} parent=1 // pred_fallthru
      _
    %40 = sfence
    %v41 = vld [vmem:[#allocation6] sm:$0xff]
    %s42 = sadd.s32 0, 8
    %s43 = scalar_lea.vmem [#allocation6], %s42
    %v44 = vld [vmem:[%s43] sm:$0xff]
    %s45 = sadd.s32 0, 16
    %s46 = scalar_lea.vmem [#allocation6], %s45
    %v47 = vld [vmem:[%s46] sm:$0xff]
    %s48 = sld [smem:[#allocation2]]
    %v49 = vstv %s48
    %v50 = vmul.f32 %v41, %v49
    %s51 = sld [smem:[#allocation2 + $0x3]]
    %v52 = vstv %s51
    %v53 = vmul.f32 %v44, %v52
    %v54 = vadd.f32 %v50, %v53
    %s55 = sld [smem:[#allocation2 + $0x6]]
    %v56 = vstv %s55
    %v57 = vmul.f32 %v47, %v56
    %v58 = vadd.f32 %v54, %v57
    %s59 = sld [smem:[#allocation2 + $0x9]]
    %v60 = vstv %s59
    %v61 = vadd.f32 %v58, %v60
    %v62 = vmul.f32 %v61, %v61
    %v63 = vmul.f32 %v62, %v61
    %v64 = vmul.f32 %v63, 0.44715
    %v65 = vadd.f32 %v61, %v64
    %v66 = vmul.f32 %v65, 0.7978846
    %v67 = vmul.f32 %v61, 0.5
    %v68 = vtanh.pop %v66
    %v69 = vadd.f32 %v68, 1.0
    %v70 = vmul.f32 %v67, %v69
    %v71 = vadd.f32 %v41, %v70
    %s72 = sld [smem:[#allocation2 + $0x1]]
    %v73 = vstv %s72
    %v74 = vmul.f32 %v41, %v73
    %s75 = sld [smem:[#allocation2 + $0x4]]
    %v76 = vstv %s75
    %v77 = vmul.f32 %v44, %v76
    %v78 = vadd.f32 %v74, %v77
    %s79 = sld [smem:[#allocation2 + $0x7]]
    %v80 = vstv %s79
    %v81 = vmul.f32 %v47, %v80
    %v82 = vadd.f32 %v78, %v81
    %s83 = sld [smem:[#allocation2 + $0xa]]
    %v84 = vstv %s83
    %v85 = vadd.f32 %v82, %v84
    %v86 = vmul.f32 %v85, %v85
    %v87 = vmul.f32 %v86, %v85
    %v88 = vmul.f32 %v87, 0.44715
    %v89 = vadd.f32 %v85, %v88
    %v90 = vmul.f32 %v89, 0.7978846
    %v91 = vmul.f32 %v85, 0.5
    %v92 = vtanh.pop %v90
    %v93 = vadd.f32 %v92, 1.0
    %v94 = vmul.f32 %v91, %v93
    %v95 = vadd.f32 %v44, %v94
    %s96 = sld [smem:[#allocation2 + $0x2]]
    %v97 = vstv %s96
    %v98 = vmul.f32 %v41, %v97
    %s99 = sld [smem:[#allocation2 + $0x5]]
    %v100 = vstv %s99
    %v101 = vmul.f32 %v44, %v100
    %v102 = vadd.f32 %v98, %v101
    %s103 = sld [smem:[#allocation2 + $0x8]]
    %v104 = vstv %s103
    %v105 = vmul.f32 %v47, %v104
    %v106 = vadd.f32 %v102, %v105
    %s107 = sld [smem:[#allocation2 + $0xb]]
    %v108 = vstv %s107
    %v109 = vadd.f32 %v106, %v108
    %v110 = vmul.f32 %v109, %v109
    %v111 = vmul.f32 %v110, %v109
    %v112 = vmul.f32 %v111, 0.44715
    %v113 = vadd.f32 %v109, %v112
    %v114 = vmul.f32 %v113, 0.7978846
    %v115 = vmul.f32 %v109, 0.5
    %v116 = vtanh.pop %v114
    %v117 = vadd.f32 %v116, 1.0
    %v118 = vmul.f32 %v115, %v117
    %v119 = vadd.f32 %v47, %v118
    %s120 = sld [smem:[#allocation2 + $0xc]]
    %v121 = vstv %s120
    %v122 = vmul.f32 %v71, %v121
    %s123 = sld [smem:[#allocation2 + $0xf]]
    %v124 = vstv %s123
    %v125 = vmul.f32 %v95, %v124
    %v126 = vadd.f32 %v122, %v125
    %s127 = sld [smem:[#allocation2 + $0x12]]
    %v128 = vstv %s127
    %v129 = vmul.f32 %v119, %v128
    %v130 = vadd.f32 %v126, %v129
    %s131 = sld [smem:[#allocation2 + $0x15]]
    %v132 = vstv %s131
    %v133 = vadd.f32 %v130, %v132
    %v134 = vmul.f32 %v133, %v133
    %v135 = vmul.f32 %v134, %v133
    %v136 = vmul.f32 %v135, 0.44715
    %v137 = vadd.f32 %v133, %v136
    %v138 = vmul.f32 %v137, 0.7978846
    %v139 = vmul.f32 %v133, 0.5
    %v140 = vtanh.pop %v138
    %v141 = vadd.f32 %v140, 1.0
    %v142 = vmul.f32 %v139, %v141
    %v143 = vadd.f32 %v71, %v142
    %s144 = sld [smem:[#allocation2 + $0xd]]
    %v145 = vstv %s144
    %v146 = vmul.f32 %v71, %v145
    %s147 = sld [smem:[#allocation2 + $0x10]]
    %v148 = vstv %s147
    %v149 = vmul.f32 %v95, %v148
    %v150 = vadd.f32 %v146, %v149
    %s151 = sld [smem:[#allocation2 + $0x13]]
    %v152 = vstv %s151
    %v153 = vmul.f32 %v119, %v152
    %v154 = vadd.f32 %v150, %v153
    %s155 = sld [smem:[#allocation2 + $0x16]]
    %v156 = vstv %s155
    %v157 = vadd.f32 %v154, %v156
    %v158 = vmul.f32 %v157, %v157
    %v159 = vmul.f32 %v158, %v157
    %v160 = vmul.f32 %v159, 0.44715
    %v161 = vadd.f32 %v157, %v160
    %v162 = vmul.f32 %v161, 0.7978846
    %v163 = vmul.f32 %v157, 0.5
    %v164 = vtanh.pop %v162
    %v165 = vadd.f32 %v164, 1.0
    %v166 = vmul.f32 %v163, %v165
    %v167 = vadd.f32 %v95, %v166
    %s168 = sld [smem:[#allocation2 + $0xe]]
    %v169 = vstv %s168
    %v170 = vmul.f32 %v71, %v169
    %s171 = sld [smem:[#allocation2 + $0x11]]
    %v172 = vstv %s171
    %v173 = vmul.f32 %v95, %v172
    %v174 = vadd.f32 %v170, %v173
    %s175 = sld [smem:[#allocation2 + $0x14]]
    %v176 = vstv %s175
    %v177 = vmul.f32 %v119, %v176
    %v178 = vadd.f32 %v174, %v177
    %s179 = sld [smem:[#allocation2 + $0x17]]
    %v180 = vstv %s179
    %v181 = vadd.f32 %v178, %v180
    %v182 = vmul.f32 %v181, %v181
    %v183 = vmul.f32 %v182, %v181
    %v184 = vmul.f32 %v183, 0.44715
    %v185 = vadd.f32 %v181, %v184
    %v186 = vmul.f32 %v185, 0.7978846
    %v187 = vmul.f32 %v181, 0.5
    %v188 = vtanh.pop %v186
    %v189 = vadd.f32 %v188, 1.0
    %v190 = vmul.f32 %v187, %v189
    %v191 = vadd.f32 %v119, %v190
    %s192 = sld [smem:[#allocation2 + $0x18]]
    %v193 = vstv %s192
    %v194 = vmul.f32 %v143, %v193
    %s195 = sld [smem:[#allocation2 + $0x1b]]
    %v196 = vstv %s195
    %v197 = vmul.f32 %v167, %v196
    %v198 = vadd.f32 %v194, %v197
    %s199 = sld [smem:[#allocation2 + $0x1e]]
    %v200 = vstv %s199
    %v201 = vmul.f32 %v191, %v200
    %v202 = vadd.f32 %v198, %v201
    %s203 = sld [smem:[#allocation2 + $0x21]]
    %v204 = vstv %s203
    %v205 = vadd.f32 %v202, %v204
    %v206 = vmul.f32 %v205, %v205
    %v207 = vmul.f32 %v206, %v205
    %v208 = vmul.f32 %v207, 0.44715
    %v209 = vadd.f32 %v205, %v208
    %v210 = vmul.f32 %v209, 0.7978846
    %v211 = vmul.f32 %v205, 0.5
    %v212 = vtanh.pop %v210
    %v213 = vadd.f32 %v212, 1.0
    %v214 = vmul.f32 %v211, %v213
    %v215 = vadd.f32 %v143, %v214
    %s216 = sld [smem:[#allocation2 + $0x19]]
    %v217 = vstv %s216
    %v218 = vmul.f32 %v143, %v217
    %s219 = sld [smem:[#allocation2 + $0x1c]]
    %v220 = vstv %s219
    %v221 = vmul.f32 %v167, %v220
    %v222 = vadd.f32 %v218, %v221
    %s223 = sld [smem:[#allocation2 + $0x1f]]
    %v224 = vstv %s223
    %v225 = vmul.f32 %v191, %v224
    %v226 = vadd.f32 %v222, %v225
    %s227 = sld [smem:[#allocation2 + $0x22]]
    %v228 = vstv %s227
    %v229 = vadd.f32 %v226, %v228
    %v230 = vmul.f32 %v229, %v229
    %v231 = vmul.f32 %v230, %v229
    %v232 = vmul.f32 %v231, 0.44715
    %v233 = vadd.f32 %v229, %v232
    %v234 = vmul.f32 %v233, 0.7978846
    %v235 = vmul.f32 %v229, 0.5
    %v236 = vtanh.pop %v234
    %v237 = vadd.f32 %v236, 1.0
    %v238 = vmul.f32 %v235, %v237
    %v239 = vadd.f32 %v167, %v238
    %s240 = sld [smem:[#allocation2 + $0x1a]]
    %v241 = vstv %s240
    %v242 = vmul.f32 %v143, %v241
    %s243 = sld [smem:[#allocation2 + $0x1d]]
    %v244 = vstv %s243
    %v245 = vmul.f32 %v167, %v244
    %v246 = vadd.f32 %v242, %v245
    %s247 = sld [smem:[#allocation2 + $0x20]]
    %v248 = vstv %s247
    %v249 = vmul.f32 %v191, %v248
    %v250 = vadd.f32 %v246, %v249
    %s251 = sld [smem:[#allocation2 + $0x23]]
    %v252 = vstv %s251
    %v253 = vadd.f32 %v250, %v252
    %v254 = vmul.f32 %v253, %v253
    %v255 = vmul.f32 %v254, %v253
    %v256 = vmul.f32 %v255, 0.44715
    %v257 = vadd.f32 %v253, %v256
    %v258 = vmul.f32 %v257, 0.7978846
    %v259 = vmul.f32 %v253, 0.5
    %v260 = vtanh.pop %v258
    %v261 = vadd.f32 %v260, 1.0
    %v262 = vmul.f32 %v259, %v261
    %v263 = vadd.f32 %v191, %v262
    %s264 = sld [smem:[#allocation2 + $0x24]]
    %v265 = vstv %s264
    %v266 = vmul.f32 %v215, %v265
    %s267 = sld [smem:[#allocation2 + $0x27]]
    %v268 = vstv %s267
    %v269 = vmul.f32 %v239, %v268
    %v270 = vadd.f32 %v266, %v269
    %s271 = sld [smem:[#allocation2 + $0x2a]]
    %v272 = vstv %s271
    %v273 = vmul.f32 %v263, %v272
    %v274 = vadd.f32 %v270, %v273
    %s275 = sld [smem:[#allocation2 + $0x2d]]
    %v276 = vstv %s275
    %v277 = vadd.f32 %v274, %v276
    %v278 = vmul.f32 %v277, %v277
    %v279 = vmul.f32 %v278, %v277
    %v280 = vmul.f32 %v279, 0.44715
    %v281 = vadd.f32 %v277, %v280
    %v282 = vmul.f32 %v281, 0.7978846
    %v283 = vmul.f32 %v277, 0.5
    %v284 = vtanh.pop %v282
    %v285 = vadd.f32 %v284, 1.0
    %v286 = vmul.f32 %v283, %v285
    %v287 = vadd.f32 %v215, %v286
    %s288 = sld [smem:[#allocation2 + $0x25]]
    %v289 = vstv %s288
    %v290 = vmul.f32 %v215, %v289
    %s291 = sld [smem:[#allocation2 + $0x28]]
    %v292 = vstv %s291
    %v293 = vmul.f32 %v239, %v292
    %v294 = vadd.f32 %v290, %v293
    %s295 = sld [smem:[#allocation2 + $0x2b]]
    %v296 = vstv %s295
    %v297 = vmul.f32 %v263, %v296
    %v298 = vadd.f32 %v294, %v297
    %s299 = sld [smem:[#allocation2 + $0x2e]]
    %v300 = vstv %s299
    %v301 = vadd.f32 %v298, %v300
    %v302 = vmul.f32 %v301, %v301
    %v303 = vmul.f32 %v302, %v301
    %v304 = vmul.f32 %v303, 0.44715
    %v305 = vadd.f32 %v301, %v304
    %v306 = vmul.f32 %v305, 0.7978846
    %v307 = vmul.f32 %v301, 0.5
    %v308 = vtanh.pop %v306
    %v309 = vadd.f32 %v308, 1.0
    %v310 = vmul.f32 %v307, %v309
    %v311 = vadd.f32 %v239, %v310
    %s312 = sld [smem:[#allocation2 + $0x26]]
    %v313 = vstv %s312
    %v314 = vmul.f32 %v215, %v313
    %s315 = sld [smem:[#allocation2 + $0x29]]
    %v316 = vstv %s315
    %v317 = vmul.f32 %v239, %v316
    %v318 = vadd.f32 %v314, %v317
    %s319 = sld [smem:[#allocation2 + $0x2c]]
    %v320 = vstv %s319
    %v321 = vmul.f32 %v263, %v320
    %v322 = vadd.f32 %v318, %v321
    %s323 = sld [smem:[#allocation2 + $0x2f]]
    %v324 = vstv %s323
    %v325 = vadd.f32 %v322, %v324
    %v326 = vmul.f32 %v325, %v325
    %v327 = vmul.f32 %v326, %v325
    %v328 = vmul.f32 %v327, 0.44715
    %v329 = vadd.f32 %v325, %v328
    %v330 = vmul.f32 %v329, 0.7978846
    %v331 = vmul.f32 %v325, 0.5
    %v332 = vtanh.pop %v330
    %v333 = vadd.f32 %v332, 1.0
    %v334 = vmul.f32 %v331, %v333
    %v335 = vadd.f32 %v263, %v334
    %s336 = sld [smem:[#allocation2 + $0x30]]
    %v337 = vstv %s336
    %v338 = vmul.f32 %v287, %v337
    %s339 = sld [smem:[#allocation2 + $0x31]]
    %v340 = vstv %s339
    %v341 = vmul.f32 %v311, %v340
    %v342 = vadd.f32 %v338, %v341
    %s343 = sld [smem:[#allocation2 + $0x32]]
    %v344 = vstv %s343
    %v345 = vmul.f32 %v335, %v344
    %v346 = vadd.f32 %v342, %v345
    %s347 = sld [smem:[#allocation2 + $0x33]]
    %v348 = vstv %s347
    %v349 = vadd.f32 %v346, %v348
    %v350 = vmul.f32 %v349, %v349
    %v351 = vmul.f32 %v350, %v349
    %v352 = vmul.f32 %v351, 0.44715
    %v353 = vadd.f32 %v349, %v352
    %v354 = vmul.f32 %v353, 0.7978846
    %v355 = vmul.f32 %v349, 0.5
    %v356 = vtanh.pop %v354
    %v357 = vadd.f32 %v356, 1.0
    %v358 = vmul.f32 %v355, %v357
    %359 = vst [vmem:[#allocation7] sm:$0xff] %v358
    // Predicated region
    $region18: #{tpu_custom_call.1} parent=1 // pred_check
      _
    $region19: #{tpu_custom_call.1} parent=1 // pred_check_branch
      %361 = sbr.rel (0) target = $region21
    $region20: #{tpu_custom_call.1} parent=1 // pred_region
      %363 = vsyncadd [#allocation4], 0
      %s365 = sshll.u32 [#allocation7], 4
      %s366 = int_to_ptr.vmem [resolvable:$true] %s365
      %s367 = sshll.u32 %s2, 4
      %s368 = int_to_ptr.hbm [resolvable:$true] %s367
      %370 = dma.vmem_to_hbm [thread:$0]  %s366, 128, %s368, [#allocation4]
    $region21: #{tpu_custom_call.1} parent=1 // pred_fallthru
      _
    // Predicated region
    $region22: #{tpu_custom_call.1} parent=1 // pred_check
      _
    $region23: #{tpu_custom_call.1} parent=1 // pred_check_branch
      %372 = sbr.rel (0) target = $region25
    $region24: #{tpu_custom_call.1} parent=1 // pred_region
      %374 = dma.done [#allocation4], 128
    $region25: #{tpu_custom_call.1} parent=1 // pred_fallthru
      _
    %375 = vsyncpa [#allocation3], 1
    %376 = vsyncpa [#allocation4], 1
    %377 = vsyncpa [#allocation5], 1

</llo_original>
